<compile_context>
chip_gen: v6e
topology: v6e:2x2x1
jax: 0.10.0
libtpu: 0.0.40
codegen_flags: <defaults>
</compile_context>

<pallas_src>
import functools

import jax
import jax.numpy as jnp
from jax.experimental import pallas as pl
from jax.experimental.pallas import tpu as pltpu


def _revconv_kernel(w_ref, b_ref, x_ref, o_ref, *, K, C_in, C_out, L):
    """VPU multiply-accumulate formulation of the tiny-channel transposed conv.

    w_ref: SMEM (K*C_in*C_out,) f32  flipped tap-major weights wf[m,i,o] = W[i,o,K-1-m]
    b_ref: SMEM (C_out,)        f32
    x_ref: VMEM (TN, C_in, L+K-1)    zero-padded along time (time on the lane axis)
    o_ref: VMEM (TN, C_out, L)       lane-dense output, already NCW layout
    """
    xb = x_ref[...].astype(jnp.float32)  # one load of the whole input block
    for o in range(C_out):
        acc = None
        for m in range(K):               # K*C_in*C_out static scalar FMAs (VPU);
            for i in range(C_in):        # the lane shift of xb goes to the XLU slot.
                w = w_ref[(m * C_in + i) * C_out + o]      # scalar read from SMEM
                term = xb[:, i, m:m + L] * w               # (TN, L) vector * scalar
                acc = term if acc is None else acc + term  # init with first tap
        o_ref[:, o, :] = (acc + b_ref[o]).astype(o_ref.dtype)


def _pick_block_n(n, bytes_per_sample, budget_bytes=2 << 20):
    """Largest batch tile that (a) fits the per-block budget and (b) divides n."""
    bn = int(max(1, min(n, budget_bytes // max(bytes_per_sample, 1))))
    while n % bn:
        bn -= 1
    return bn


def reverse_max_cross_correlation(x, weight, bias, shapelets_size):
    """Forward of ReverseMaxCrossCorrelationBlock.

    x:      (N, num_shapelets, L)             -- PyTorch NCW
    weight: (num_shapelets, in_channels, K)   -- nn.ConvTranspose1d weight layout
    bias:   (in_channels,)
    returns (N, in_channels, L)
    """
    N, c_in, L = x.shape
    K = shapelets_size
    c_out = weight.shape[1]

    # ConvTranspose1d (stride=1) followed by the module's centered crop equals a
    # direct "gather" convolution over x padded with (K-1-pad) zeros on the left
    # and pad zeros on the right.  (Valid for K >= 2; K == 1 makes the PyTorch
    # crop itself empty by construction, so it is not supported here.)
    pad = (K - 1) // 2
    pad_left = K - 1 - pad
    pad_right = pad
    Lp = L + K - 1

    # Keep NCW layout: pad only along time (the lane axis); no transpose passes.
    x_pad = jnp.pad(x, ((0, 0), (0, 0), (pad_left, pad_right)))

    # Flipped, tap-major, flattened weights for scalar SMEM reads in the kernel.
    w_flat = jnp.transpose(jnp.flip(weight, axis=-1), (2, 0, 1)).reshape(-1)
    w_flat = w_flat.astype(jnp.float32)
    b_flat = bias.reshape(-1).astype(jnp.float32)

    # Batch-tile so double-buffered (input block + output block) stays comfortably
    # inside scoped VMEM on every generation (v5e/v6e defaults and v7x's 64 MiB).
    bytes_per_sample = (c_in * Lp + c_out * L) * x.dtype.itemsize
    block_n = _pick_block_n(N, bytes_per_sample)
    grid = (N // block_n,)

    out = pl.pallas_call(
        functools.partial(_revconv_kernel, K=K, C_in=c_in, C_out=c_out, L=L),
        out_shape=jax.ShapeDtypeStruct((N, c_out, L), x.dtype),
        grid=grid,
        in_specs=[
            pl.BlockSpec(memory_space=pltpu.MemorySpace.SMEM),       # weights (scalars)
            pl.BlockSpec(memory_space=pltpu.MemorySpace.SMEM),       # bias
            pl.BlockSpec((block_n, c_in, Lp), lambda n: (n, 0, 0)),  # x, time on lanes
        ],
        out_specs=pl.BlockSpec((block_n, c_out, L), lambda n: (n, 0, 0)),  # lane-dense NCW
        compiler_params=pltpu.CompilerParams(
            dimension_semantics=("parallel",),   # megacore splits batch tiles (v7x)
            vmem_limit_bytes=32 * 1024 * 1024,   # explicit; safe on v5e/v6e/v7x
        ),
    )(w_flat, b_flat, x_pad)

    return out  # already (N, in_channels, L) == PyTorch NCW


def _reference_forward(x, weight, bias, K):
    """Pure-JAX reference, straight from the ConvTranspose1d scatter definition."""
    N, c_in, L = x.shape
    c_out = weight.shape[1]
    Lout = L + K - 1
    y = jnp.zeros((N, c_out, Lout), x.dtype) + bias[None, :, None]
    for k in range(K):
        y = y.at[:, :, k:k + L].add(jnp.einsum("nil,io->nol", x, weight[:, :, k]))
    pad = (K - 1) // 2
    return y[:, :, pad: Lout - pad - (K - 1) % 2]


if __name__ == "__main__":
    # Module hyper-parameters (small, consistent with the PyTorch module).
    shapelets_size = 5      # kernel_size K
    num_shapelets = 4       # ConvTranspose1d in_channels
    in_channels = 1         # ConvTranspose1d out_channels
    batch, L = 2, 16

    key = jax.random.PRNGKey(0)
    kx, kw, kb = jax.random.split(key, 3)

    # Deterministic synthetic parameters (same shapes nn.ConvTranspose1d holds).
    x = jax.random.normal(kx, (batch, num_shapelets, L), dtype=jnp.float32)
    weight = jax.random.normal(
        kw, (num_shapelets, in_channels, shapelets_size), dtype=jnp.float32
    ) * 0.1
    bias = jax.random.normal(kb, (in_channels,), dtype=jnp.float32) * 0.1

    out = reverse_max_cross_correlation(x, weight, bias, shapelets_size)
    out = jax.block_until_ready(out)

    ref = _reference_forward(x, weight, bias, shapelets_size)
    assert out.shape == (batch, in_channels, L), out.shape
    assert jnp.allclose(out, ref, atol=1e-5, rtol=1e-5), float(jnp.abs(out - ref).max())

    print("KERNEL_OK")
</pallas_src>

<mosaic_0001>
module attributes {stable_mosaic.version = 11 : i64} {
  func.func @_revconv_kernel(%arg0: i32, %arg1: memref<20xf32, #tpu.memory_space<smem>>, %arg2: memref<1xf32, #tpu.memory_space<smem>>, %arg3: memref<2x4x20xf32, #tpu.memory_space<vmem>>, %arg4: memref<2x1x16xf32, #tpu.memory_space<vmem>>) attributes {dimension_semantics = [#tpu.dimension_semantics<parallel>], iteration_bounds = array<i64: 1>, scalar_prefetch = 0 : i64, scratch_operands = 0 : i64, tpu.core_type = #tpu.core_type<tc>, window_params = [{transform_indices = @transform_0, window_bounds = array<i64: 20>}, {transform_indices = @transform_1, window_bounds = array<i64: 1>}, {transform_indices = @transform_2, window_bounds = array<i64: 2, 4, 20>}, {transform_indices = @transform_3, window_bounds = array<i64: 2, 1, 16>}]} {
    %c0 = arith.constant 0 : index
    %c0_0 = arith.constant 0 : index
    %c0_1 = arith.constant 0 : index
    %0 = vector.load %arg3[%c0, %c0_0, %c0_1] : memref<2x4x20xf32, #tpu.memory_space<vmem>>, vector<2x4x20xf32>
    %c0_2 = arith.constant 0 : index
    %1 = memref.load %arg1[%c0_2] : memref<20xf32, #tpu.memory_space<smem>>
    %2 = vector.extract_strided_slice %0 {offsets = [0, 0, 0], sizes = [2, 1, 16], strides = [1, 1, 1]} : vector<2x4x20xf32> to vector<2x1x16xf32>
    %3 = vector.shape_cast %2 : vector<2x1x16xf32> to vector<2x16xf32>
    %4 = vector.broadcast %1 : f32 to vector<2x16xf32>
    %5 = arith.mulf %3, %4 : vector<2x16xf32>
    %c1 = arith.constant 1 : index
    %6 = memref.load %arg1[%c1] : memref<20xf32, #tpu.memory_space<smem>>
    %7 = vector.extract_strided_slice %0 {offsets = [0, 1, 0], sizes = [2, 1, 16], strides = [1, 1, 1]} : vector<2x4x20xf32> to vector<2x1x16xf32>
    %8 = vector.shape_cast %7 : vector<2x1x16xf32> to vector<2x16xf32>
    %9 = vector.broadcast %6 : f32 to vector<2x16xf32>
    %10 = arith.mulf %8, %9 : vector<2x16xf32>
    %11 = arith.addf %5, %10 : vector<2x16xf32>
    %c2 = arith.constant 2 : index
    %12 = memref.load %arg1[%c2] : memref<20xf32, #tpu.memory_space<smem>>
    %13 = vector.extract_strided_slice %0 {offsets = [0, 2, 0], sizes = [2, 1, 16], strides = [1, 1, 1]} : vector<2x4x20xf32> to vector<2x1x16xf32>
    %14 = vector.shape_cast %13 : vector<2x1x16xf32> to vector<2x16xf32>
    %15 = vector.broadcast %12 : f32 to vector<2x16xf32>
    %16 = arith.mulf %14, %15 : vector<2x16xf32>
    %17 = arith.addf %11, %16 : vector<2x16xf32>
    %c3 = arith.constant 3 : index
    %18 = memref.load %arg1[%c3] : memref<20xf32, #tpu.memory_space<smem>>
    %19 = vector.extract_strided_slice %0 {offsets = [0, 3, 0], sizes = [2, 1, 16], strides = [1, 1, 1]} : vector<2x4x20xf32> to vector<2x1x16xf32>
    %20 = vector.shape_cast %19 : vector<2x1x16xf32> to vector<2x16xf32>
    %21 = vector.broadcast %18 : f32 to vector<2x16xf32>
    %22 = arith.mulf %20, %21 : vector<2x16xf32>
    %23 = arith.addf %17, %22 : vector<2x16xf32>
    %c4 = arith.constant 4 : index
    %24 = memref.load %arg1[%c4] : memref<20xf32, #tpu.memory_space<smem>>
    %25 = vector.extract_strided_slice %0 {offsets = [0, 0, 1], sizes = [2, 1, 16], strides = [1, 1, 1]} : vector<2x4x20xf32> to vector<2x1x16xf32>
    %26 = vector.shape_cast %25 : vector<2x1x16xf32> to vector<2x16xf32>
    %27 = vector.broadcast %24 : f32 to vector<2x16xf32>
    %28 = arith.mulf %26, %27 : vector<2x16xf32>
    %29 = arith.addf %23, %28 : vector<2x16xf32>
    %c5 = arith.constant 5 : index
    %30 = memref.load %arg1[%c5] : memref<20xf32, #tpu.memory_space<smem>>
    %31 = vector.extract_strided_slice %0 {offsets = [0, 1, 1], sizes = [2, 1, 16], strides = [1, 1, 1]} : vector<2x4x20xf32> to vector<2x1x16xf32>
    %32 = vector.shape_cast %31 : vector<2x1x16xf32> to vector<2x16xf32>
    %33 = vector.broadcast %30 : f32 to vector<2x16xf32>
    %34 = arith.mulf %32, %33 : vector<2x16xf32>
    %35 = arith.addf %29, %34 : vector<2x16xf32>
    %c6 = arith.constant 6 : index
    %36 = memref.load %arg1[%c6] : memref<20xf32, #tpu.memory_space<smem>>
    %37 = vector.extract_strided_slice %0 {offsets = [0, 2, 1], sizes = [2, 1, 16], strides = [1, 1, 1]} : vector<2x4x20xf32> to vector<2x1x16xf32>
    %38 = vector.shape_cast %37 : vector<2x1x16xf32> to vector<2x16xf32>
    %39 = vector.broadcast %36 : f32 to vector<2x16xf32>
    %40 = arith.mulf %38, %39 : vector<2x16xf32>
    %41 = arith.addf %35, %40 : vector<2x16xf32>
    %c7 = arith.constant 7 : index
    %42 = memref.load %arg1[%c7] : memref<20xf32, #tpu.memory_space<smem>>
    %43 = vector.extract_strided_slice %0 {offsets = [0, 3, 1], sizes = [2, 1, 16], strides = [1, 1, 1]} : vector<2x4x20xf32> to vector<2x1x16xf32>
    %44 = vector.shape_cast %43 : vector<2x1x16xf32> to vector<2x16xf32>
    %45 = vector.broadcast %42 : f32 to vector<2x16xf32>
    %46 = arith.mulf %44, %45 : vector<2x16xf32>
    %47 = arith.addf %41, %46 : vector<2x16xf32>
    %c8 = arith.constant 8 : index
    %48 = memref.load %arg1[%c8] : memref<20xf32, #tpu.memory_space<smem>>
    %49 = vector.extract_strided_slice %0 {offsets = [0, 0, 2], sizes = [2, 1, 16], strides = [1, 1, 1]} : vector<2x4x20xf32> to vector<2x1x16xf32>
    %50 = vector.shape_cast %49 : vector<2x1x16xf32> to vector<2x16xf32>
    %51 = vector.broadcast %48 : f32 to vector<2x16xf32>
    %52 = arith.mulf %50, %51 : vector<2x16xf32>
    %53 = arith.addf %47, %52 : vector<2x16xf32>
    %c9 = arith.constant 9 : index
    %54 = memref.load %arg1[%c9] : memref<20xf32, #tpu.memory_space<smem>>
    %55 = vector.extract_strided_slice %0 {offsets = [0, 1, 2], sizes = [2, 1, 16], strides = [1, 1, 1]} : vector<2x4x20xf32> to vector<2x1x16xf32>
    %56 = vector.shape_cast %55 : vector<2x1x16xf32> to vector<2x16xf32>
    %57 = vector.broadcast %54 : f32 to vector<2x16xf32>
    %58 = arith.mulf %56, %57 : vector<2x16xf32>
    %59 = arith.addf %53, %58 : vector<2x16xf32>
    %c10 = arith.constant 10 : index
    %60 = memref.load %arg1[%c10] : memref<20xf32, #tpu.memory_space<smem>>
    %61 = vector.extract_strided_slice %0 {offsets = [0, 2, 2], sizes = [2, 1, 16], strides = [1, 1, 1]} : vector<2x4x20xf32> to vector<2x1x16xf32>
    %62 = vector.shape_cast %61 : vector<2x1x16xf32> to vector<2x16xf32>
    %63 = vector.broadcast %60 : f32 to vector<2x16xf32>
    %64 = arith.mulf %62, %63 : vector<2x16xf32>
    %65 = arith.addf %59, %64 : vector<2x16xf32>
    %c11 = arith.constant 11 : index
    %66 = memref.load %arg1[%c11] : memref<20xf32, #tpu.memory_space<smem>>
    %67 = vector.extract_strided_slice %0 {offsets = [0, 3, 2], sizes = [2, 1, 16], strides = [1, 1, 1]} : vector<2x4x20xf32> to vector<2x1x16xf32>
    %68 = vector.shape_cast %67 : vector<2x1x16xf32> to vector<2x16xf32>
    %69 = vector.broadcast %66 : f32 to vector<2x16xf32>
    %70 = arith.mulf %68, %69 : vector<2x16xf32>
    %71 = arith.addf %65, %70 : vector<2x16xf32>
    %c12 = arith.constant 12 : index
    %72 = memref.load %arg1[%c12] : memref<20xf32, #tpu.memory_space<smem>>
    %73 = vector.extract_strided_slice %0 {offsets = [0, 0, 3], sizes = [2, 1, 16], strides = [1, 1, 1]} : vector<2x4x20xf32> to vector<2x1x16xf32>
    %74 = vector.shape_cast %73 : vector<2x1x16xf32> to vector<2x16xf32>
    %75 = vector.broadcast %72 : f32 to vector<2x16xf32>
    %76 = arith.mulf %74, %75 : vector<2x16xf32>
    %77 = arith.addf %71, %76 : vector<2x16xf32>
    %c13 = arith.constant 13 : index
    %78 = memref.load %arg1[%c13] : memref<20xf32, #tpu.memory_space<smem>>
    %79 = vector.extract_strided_slice %0 {offsets = [0, 1, 3], sizes = [2, 1, 16], strides = [1, 1, 1]} : vector<2x4x20xf32> to vector<2x1x16xf32>
    %80 = vector.shape_cast %79 : vector<2x1x16xf32> to vector<2x16xf32>
    %81 = vector.broadcast %78 : f32 to vector<2x16xf32>
    %82 = arith.mulf %80, %81 : vector<2x16xf32>
    %83 = arith.addf %77, %82 : vector<2x16xf32>
    %c14 = arith.constant 14 : index
    %84 = memref.load %arg1[%c14] : memref<20xf32, #tpu.memory_space<smem>>
    %85 = vector.extract_strided_slice %0 {offsets = [0, 2, 3], sizes = [2, 1, 16], strides = [1, 1, 1]} : vector<2x4x20xf32> to vector<2x1x16xf32>
    %86 = vector.shape_cast %85 : vector<2x1x16xf32> to vector<2x16xf32>
    %87 = vector.broadcast %84 : f32 to vector<2x16xf32>
    %88 = arith.mulf %86, %87 : vector<2x16xf32>
    %89 = arith.addf %83, %88 : vector<2x16xf32>
    %c15 = arith.constant 15 : index
    %90 = memref.load %arg1[%c15] : memref<20xf32, #tpu.memory_space<smem>>
    %91 = vector.extract_strided_slice %0 {offsets = [0, 3, 3], sizes = [2, 1, 16], strides = [1, 1, 1]} : vector<2x4x20xf32> to vector<2x1x16xf32>
    %92 = vector.shape_cast %91 : vector<2x1x16xf32> to vector<2x16xf32>
    %93 = vector.broadcast %90 : f32 to vector<2x16xf32>
    %94 = arith.mulf %92, %93 : vector<2x16xf32>
    %95 = arith.addf %89, %94 : vector<2x16xf32>
    %c16 = arith.constant 16 : index
    %96 = memref.load %arg1[%c16] : memref<20xf32, #tpu.memory_space<smem>>
    %97 = vector.extract_strided_slice %0 {offsets = [0, 0, 4], sizes = [2, 1, 16], strides = [1, 1, 1]} : vector<2x4x20xf32> to vector<2x1x16xf32>
    %98 = vector.shape_cast %97 : vector<2x1x16xf32> to vector<2x16xf32>
    %99 = vector.broadcast %96 : f32 to vector<2x16xf32>
    %100 = arith.mulf %98, %99 : vector<2x16xf32>
    %101 = arith.addf %95, %100 : vector<2x16xf32>
    %c17 = arith.constant 17 : index
    %102 = memref.load %arg1[%c17] : memref<20xf32, #tpu.memory_space<smem>>
    %103 = vector.extract_strided_slice %0 {offsets = [0, 1, 4], sizes = [2, 1, 16], strides = [1, 1, 1]} : vector<2x4x20xf32> to vector<2x1x16xf32>
    %104 = vector.shape_cast %103 : vector<2x1x16xf32> to vector<2x16xf32>
    %105 = vector.broadcast %102 : f32 to vector<2x16xf32>
    %106 = arith.mulf %104, %105 : vector<2x16xf32>
    %107 = arith.addf %101, %106 : vector<2x16xf32>
    %c18 = arith.constant 18 : index
    %108 = memref.load %arg1[%c18] : memref<20xf32, #tpu.memory_space<smem>>
    %109 = vector.extract_strided_slice %0 {offsets = [0, 2, 4], sizes = [2, 1, 16], strides = [1, 1, 1]} : vector<2x4x20xf32> to vector<2x1x16xf32>
    %110 = vector.shape_cast %109 : vector<2x1x16xf32> to vector<2x16xf32>
    %111 = vector.broadcast %108 : f32 to vector<2x16xf32>
    %112 = arith.mulf %110, %111 : vector<2x16xf32>
    %113 = arith.addf %107, %112 : vector<2x16xf32>
    %c19 = arith.constant 19 : index
    %114 = memref.load %arg1[%c19] : memref<20xf32, #tpu.memory_space<smem>>
    %115 = vector.extract_strided_slice %0 {offsets = [0, 3, 4], sizes = [2, 1, 16], strides = [1, 1, 1]} : vector<2x4x20xf32> to vector<2x1x16xf32>
    %116 = vector.shape_cast %115 : vector<2x1x16xf32> to vector<2x16xf32>
    %117 = vector.broadcast %114 : f32 to vector<2x16xf32>
    %118 = arith.mulf %116, %117 : vector<2x16xf32>
    %119 = arith.addf %113, %118 : vector<2x16xf32>
    %c0_3 = arith.constant 0 : index
    %120 = memref.load %arg2[%c0_3] : memref<1xf32, #tpu.memory_space<smem>>
    %121 = vector.broadcast %120 : f32 to vector<2x16xf32>
    %122 = arith.addf %119, %121 : vector<2x16xf32>
    %c0_4 = arith.constant 0 : index
    %c0_5 = arith.constant 0 : index
    %c0_6 = arith.constant 0 : index
    %123 = vector.load %arg4[%c0_4, %c0_5, %c0_6] : memref<2x1x16xf32, #tpu.memory_space<vmem>>, vector<2x1x16xf32>
    %124 = vector.shape_cast %123 : vector<2x1x16xf32> to vector<2x16xf32>
    %125 = vector.shape_cast %122 : vector<2x16xf32> to vector<2x1x16xf32>
    tpu.vector_store %arg4[%c0_4, %c0_5, %c0_6], %125 {strides = array<i32>} : memref<2x1x16xf32, #tpu.memory_space<vmem>>, vector<2x1x16xf32>,
    return
  }
  func.func @transform_0(%arg0: i32) -> i32 {
    %c0_i32 = arith.constant 0 : i32
    %c0_i32_0 = arith.constant 0 : i32
    return %c0_i32 : i32
  }
  func.func @transform_1(%arg0: i32) -> i32 {
    %c0_i32 = arith.constant 0 : i32
    %c0_i32_0 = arith.constant 0 : i32
    return %c0_i32 : i32
  }
  func.func @transform_2(%arg0: i32) -> (i32, i32, i32) {
    %c0_i32 = arith.constant 0 : i32
    %c0_i32_0 = arith.constant 0 : i32
    %c0_i32_1 = arith.constant 0 : i32
    return %arg0, %c0_i32, %c0_i32_0 : i32, i32, i32
  }
  func.func @transform_3(%arg0: i32) -> (i32, i32, i32) {
    %c0_i32 = arith.constant 0 : i32
    %c0_i32_0 = arith.constant 0 : i32
    %c0_i32_1 = arith.constant 0 : i32
    return %arg0, %c0_i32, %c0_i32_0 : i32, i32, i32
  }
}

</mosaic_0001>

<llo_original>
// kernel: tpu_custom_call.1
$region0: #{tpu_custom_call.1}
  #allocation0 [shape = 'u32[]', space=smem, size = 0x4, offset = 0x4, fixed_abs, tag = 'smem constant byte address 0x4 - core index']
  #allocation1 [shape = 'u32[144,128]{1,0:T(1,128)}', space=vmem, size = 0x12000, scoped, tag = 'internal scratch']
  #allocation2 [shape = 'f32[1]{0:T(128)S(6)}', space=smem, size = 0x200, scoped, tag = 'scoped memory for tpu_custom_call.1']
  %s0 = inlined_call_operand.vmem [shape: f32[20], index: 0, kind: input, shape index: {}]
  %s1 = inlined_call_operand.<no memory space> [shape: f32[1], index: 1, kind: input, shape index: {}]
  %s2 = inlined_call_operand.hbm [shape: f32[2,4,20], index: 2, kind: input, shape index: {}]
  %s3 = inlined_call_operand.hbm [shape: f32[2,1,16], index: 3, kind: output, shape index: {}]
  %s4 = sld [smem:[#allocation0]]
  $region30: #{tpu_custom_call.1} parent=0
    _
  %s6 = ssub.s32 1, %s4
  %s7 = scalar_select 0, %s6, %s4
  %8 = sst [smem:[#allocation2]] %s1
  $region1: #{tpu_custom_call.1} parent=0
    #allocation3 [shape = 'u8[512]{0}', space=smem, size = 0x200, scoped, tag = 'input window, operand 0, single buffered']
    #allocation4 [shape = 's32[1]{0}', space=sflag, size = 0x4, scoped, tag = 'scoped memory for tpu_custom_call.1']
    #allocation5 [shape = 's32[1]{0}', space=sflag, size = 0x4, scoped, tag = 'scoped memory for tpu_custom_call.1']
    #allocation6 [shape = 's32[1]{0}', space=sflag, size = 0x4, scoped, tag = 'scoped memory for tpu_custom_call.1']
    #allocation7 [shape = 'u8[4096]{0}', space=vmem, size = 0x1000, scoped, tag = 'input window, operand 2, single buffered']
    #allocation8 [shape = 'u8[1024]{0}', space=vmem, size = 0x400, scoped, tag = 'output window, operand 0, single buffered']
    %9 = vsyncpa [#allocation6], 0
    %10 = vsyncpa [#allocation4], 0
    %11 = vsyncpa [#allocation5], 0
    // Predicated region
    $region2: #{tpu_custom_call.1} parent=1 // pred_check
      _
    $region3: #{tpu_custom_call.1} parent=1 // pred_check_branch
      %13 = sbr.rel (0) target = $region5
    $region4: #{tpu_custom_call.1} parent=1 // pred_region
      %s15 = ssub.s32 16, 16
      %16 = vsyncadd [#allocation6], %s15
      %s18 = sshll.u32 %s0, 4
      %s19 = int_to_ptr.vmem [resolvable:$true] %s18
      %21 = dma.vmem_to_smem %s19, 16, [#allocation3], [#allocation6]
    $region5: #{tpu_custom_call.1} parent=1 // pred_fallthru
      _
    // Predicated region
    $region6: #{tpu_custom_call.1} parent=1 // pred_check
      _
    $region7: #{tpu_custom_call.1} parent=1 // pred_check_branch
      %23 = sbr.rel (0) target = $region9
    $region8: #{tpu_custom_call.1} parent=1 // pred_region
      _
    $region9: #{tpu_custom_call.1} parent=1 // pred_fallthru
      _
    // Predicated region
    $region10: #{tpu_custom_call.1} parent=1 // pred_check
      _
    $region11: #{tpu_custom_call.1} parent=1 // pred_check_branch
      %25 = sbr.rel (0) target = $region13
    $region12: #{tpu_custom_call.1} parent=1 // pred_region
      %s27 = ssub.s32 128, 128
      %28 = vsyncadd [#allocation4], %s27
      %s29 = sshll.u32 [#allocation7], 4
      %s30 = int_to_ptr.vmem [resolvable:$true] %s29
      %35 = dma.hbm_to_vmem [thread:$0]  %s2, 128, %s30, [#allocation4], 64, 64, 4
    $region13: #{tpu_custom_call.1} parent=1 // pred_fallthru
      _
    // Predicated region
    $region14: #{tpu_custom_call.1} parent=1 // pred_check
      _
    $region15: #{tpu_custom_call.1} parent=1 // pred_check_branch
      %37 = sbr.rel (0) target = $region17
    $region16: #{tpu_custom_call.1} parent=1 // pred_region
      %38 = dma.done [#allocation6], 16
    $region17: #{tpu_custom_call.1} parent=1 // pred_fallthru
      _
    // Predicated region
    $region18: #{tpu_custom_call.1} parent=1 // pred_check
      _
    $region19: #{tpu_custom_call.1} parent=1 // pred_check_branch
      %40 = sbr.rel (0) target = $region21
    $region20: #{tpu_custom_call.1} parent=1 // pred_region
      %41 = dma.done [#allocation4], 128
    $region21: #{tpu_custom_call.1} parent=1 // pred_fallthru
      _
    %42 = sfence
    %v43 = vld [vmem:[#allocation7] sm:$0xf]
    %v44 = vld [vmem:[#allocation7 + $0x4] sm:$0xf]
    %s45 = sld [smem:[#allocation3]]
    %v46 = vstv %s45
    %v47 = vmul.f32 %v43, %v46
    %v48 = vmul.f32 %v44, %v46
    %s49 = sld [smem:[#allocation3 + $0x1]]
    %v50 = vstv %s49
    %v51 = vmul.f32 %v43, %v50
    %v52 = vmul.f32 %v44, %v50
    %v55 = vrot.slane %v51, 1
    %v56 = vrot.slane %v52, 1
    %v59 = vadd.f32 %v47, %v55
    %v60 = vadd.f32 %v48, %v56
    %s61 = sld [smem:[#allocation3 + $0x2]]
    %v62 = vstv %s61
    %v63 = vmul.f32 %v43, %v62
    %v64 = vmul.f32 %v44, %v62
    %v67 = vrot.slane %v63, 2
    %v68 = vrot.slane %v64, 2
    %v71 = vadd.f32 %v59, %v67
    %v72 = vadd.f32 %v60, %v68
    %s73 = sld [smem:[#allocation3 + $0x3]]
    %v74 = vstv %s73
    %v75 = vmul.f32 %v43, %v74
    %v76 = vmul.f32 %v44, %v74
    %v79 = vrot.slane %v75, 3
    %v80 = vrot.slane %v76, 3
    %v83 = vadd.f32 %v71, %v79
    %v84 = vadd.f32 %v72, %v80
    %s85 = sld [smem:[#allocation3 + $0x4]]
    %v86 = vstv %s85
    %v87 = vmul.f32 %v43, %v86
    %v88 = vmul.f32 %v44, %v86
    %91 = vrot.lane.b32.xlu0 %v87, 127
    %v92 = vpop.permute.xlu0 %91
    %93 = vrot.lane.b32.xlu0 %v88, 127
    %v94 = vpop.permute.xlu0 %93
    %v97 = vadd.f32 %v83, %v92
    %v98 = vadd.f32 %v84, %v94
    %s99 = sld [smem:[#allocation3 + $0x5]]
    %v100 = vstv %s99
    %v101 = vmul.f32 %v43, %v100
    %v102 = vmul.f32 %v44, %v100
    %v105 = vrot.slane %v101, 1
    %v106 = vrot.slane %v102, 1
    %107 = vrot.lane.b32.xlu0 %v105, 127
    %v108 = vpop.permute.xlu0 %107
    %109 = vrot.lane.b32.xlu0 %v106, 127
    %v110 = vpop.permute.xlu0 %109
    %v113 = vadd.f32 %v97, %v108
    %v114 = vadd.f32 %v98, %v110
    %s115 = sld [smem:[#allocation3 + $0x6]]
    %v116 = vstv %s115
    %v117 = vmul.f32 %v43, %v116
    %v118 = vmul.f32 %v44, %v116
    %v121 = vrot.slane %v117, 2
    %v122 = vrot.slane %v118, 2
    %123 = vrot.lane.b32.xlu0 %v121, 127
    %v124 = vpop.permute.xlu0 %123
    %125 = vrot.lane.b32.xlu0 %v122, 127
    %v126 = vpop.permute.xlu0 %125
    %v129 = vadd.f32 %v113, %v124
    %v130 = vadd.f32 %v114, %v126
    %s131 = sld [smem:[#allocation3 + $0x7]]
    %v132 = vstv %s131
    %v133 = vmul.f32 %v43, %v132
    %v134 = vmul.f32 %v44, %v132
    %v137 = vrot.slane %v133, 3
    %v138 = vrot.slane %v134, 3
    %139 = vrot.lane.b32.xlu0 %v137, 127
    %v140 = vpop.permute.xlu0 %139
    %141 = vrot.lane.b32.xlu0 %v138, 127
    %v142 = vpop.permute.xlu0 %141
    %v145 = vadd.f32 %v129, %v140
    %v146 = vadd.f32 %v130, %v142
    %s147 = sld [smem:[#allocation3 + $0x8]]
    %v148 = vstv %s147
    %v149 = vmul.f32 %v43, %v148
    %v150 = vmul.f32 %v44, %v148
    %153 = vrot.lane.b32.xlu0 %v149, 126
    %v154 = vpop.permute.xlu0 %153
    %155 = vrot.lane.b32.xlu0 %v150, 126
    %v156 = vpop.permute.xlu0 %155
    %v159 = vadd.f32 %v145, %v154
    %v160 = vadd.f32 %v146, %v156
    %s161 = sld [smem:[#allocation3 + $0x9]]
    %v162 = vstv %s161
    %v163 = vmul.f32 %v43, %v162
    %v164 = vmul.f32 %v44, %v162
    %v167 = vrot.slane %v163, 1
    %v168 = vrot.slane %v164, 1
    %169 = vrot.lane.b32.xlu0 %v167, 126
    %v170 = vpop.permute.xlu0 %169
    %171 = vrot.lane.b32.xlu0 %v168, 126
    %v172 = vpop.permute.xlu0 %171
    %v175 = vadd.f32 %v159, %v170
    %v176 = vadd.f32 %v160, %v172
    %s177 = sld [smem:[#allocation3 + $0xa]]
    %v178 = vstv %s177
    %v179 = vmul.f32 %v43, %v178
    %v180 = vmul.f32 %v44, %v178
    %v183 = vrot.slane %v179, 2
    %v184 = vrot.slane %v180, 2
    %185 = vrot.lane.b32.xlu0 %v183, 126
    %v186 = vpop.permute.xlu0 %185
    %187 = vrot.lane.b32.xlu0 %v184, 126
    %v188 = vpop.permute.xlu0 %187
    %v191 = vadd.f32 %v175, %v186
    %v192 = vadd.f32 %v176, %v188
    %s193 = sld [smem:[#allocation3 + $0xb]]
    %v194 = vstv %s193
    %v195 = vmul.f32 %v43, %v194
    %v196 = vmul.f32 %v44, %v194
    %v199 = vrot.slane %v195, 3
    %v200 = vrot.slane %v196, 3
    %201 = vrot.lane.b32.xlu0 %v199, 126
    %v202 = vpop.permute.xlu0 %201
    %203 = vrot.lane.b32.xlu0 %v200, 126
    %v204 = vpop.permute.xlu0 %203
    %v207 = vadd.f32 %v191, %v202
    %v208 = vadd.f32 %v192, %v204
    %s209 = sld [smem:[#allocation3 + $0xc]]
    %v210 = vstv %s209
    %v211 = vmul.f32 %v43, %v210
    %v212 = vmul.f32 %v44, %v210
    %215 = vrot.lane.b32.xlu0 %v211, 125
    %v216 = vpop.permute.xlu0 %215
    %217 = vrot.lane.b32.xlu0 %v212, 125
    %v218 = vpop.permute.xlu0 %217
    %v221 = vadd.f32 %v207, %v216
    %v222 = vadd.f32 %v208, %v218
    %s223 = sld [smem:[#allocation3 + $0xd]]
    %v224 = vstv %s223
    %v225 = vmul.f32 %v43, %v224
    %v226 = vmul.f32 %v44, %v224
    %v229 = vrot.slane %v225, 1
    %v230 = vrot.slane %v226, 1
    %231 = vrot.lane.b32.xlu0 %v229, 125
    %v232 = vpop.permute.xlu0 %231
    %233 = vrot.lane.b32.xlu0 %v230, 125
    %v234 = vpop.permute.xlu0 %233
    %v237 = vadd.f32 %v221, %v232
    %v238 = vadd.f32 %v222, %v234
    %s239 = sld [smem:[#allocation3 + $0xe]]
    %v240 = vstv %s239
    %v241 = vmul.f32 %v43, %v240
    %v242 = vmul.f32 %v44, %v240
    %v245 = vrot.slane %v241, 2
    %v246 = vrot.slane %v242, 2
    %247 = vrot.lane.b32.xlu0 %v245, 125
    %v248 = vpop.permute.xlu0 %247
    %249 = vrot.lane.b32.xlu0 %v246, 125
    %v250 = vpop.permute.xlu0 %249
    %v253 = vadd.f32 %v237, %v248
    %v254 = vadd.f32 %v238, %v250
    %s255 = sld [smem:[#allocation3 + $0xf]]
    %v256 = vstv %s255
    %v257 = vmul.f32 %v43, %v256
    %v258 = vmul.f32 %v44, %v256
    %v261 = vrot.slane %v257, 3
    %v262 = vrot.slane %v258, 3
    %263 = vrot.lane.b32.xlu0 %v261, 125
    %v264 = vpop.permute.xlu0 %263
    %265 = vrot.lane.b32.xlu0 %v262, 125
    %v266 = vpop.permute.xlu0 %265
    %v269 = vadd.f32 %v253, %v264
    %v270 = vadd.f32 %v254, %v266
    %s271 = sld [smem:[#allocation3 + $0x10]]
    %v272 = vstv %s271
    %v273 = vmul.f32 %v43, %v272
    %v274 = vmul.f32 %v44, %v272
    %277 = vrot.lane.b32.xlu0 %v273, 124
    %v278 = vpop.permute.xlu0 %277
    %279 = vrot.lane.b32.xlu0 %v274, 124
    %v280 = vpop.permute.xlu0 %279
    %v283 = vadd.f32 %v269, %v278
    %v284 = vadd.f32 %v270, %v280
    %s285 = sld [smem:[#allocation3 + $0x11]]
    %v286 = vstv %s285
    %v287 = vmul.f32 %v43, %v286
    %v288 = vmul.f32 %v44, %v286
    %v291 = vrot.slane %v287, 1
    %v292 = vrot.slane %v288, 1
    %293 = vrot.lane.b32.xlu0 %v291, 124
    %v294 = vpop.permute.xlu0 %293
    %295 = vrot.lane.b32.xlu0 %v292, 124
    %v296 = vpop.permute.xlu0 %295
    %v299 = vadd.f32 %v283, %v294
    %v300 = vadd.f32 %v284, %v296
    %s301 = sld [smem:[#allocation3 + $0x12]]
    %v302 = vstv %s301
    %v303 = vmul.f32 %v43, %v302
    %v304 = vmul.f32 %v44, %v302
    %v307 = vrot.slane %v303, 2
    %v308 = vrot.slane %v304, 2
    %309 = vrot.lane.b32.xlu0 %v307, 124
    %v310 = vpop.permute.xlu0 %309
    %311 = vrot.lane.b32.xlu0 %v308, 124
    %v312 = vpop.permute.xlu0 %311
    %v315 = vadd.f32 %v299, %v310
    %v316 = vadd.f32 %v300, %v312
    %s317 = sld [smem:[#allocation3 + $0x13]]
    %v318 = vstv %s317
    %v319 = vmul.f32 %v43, %v318
    %v320 = vmul.f32 %v44, %v318
    %v323 = vrot.slane %v319, 3
    %v324 = vrot.slane %v320, 3
    %325 = vrot.lane.b32.xlu0 %v323, 124
    %v326 = vpop.permute.xlu0 %325
    %327 = vrot.lane.b32.xlu0 %v324, 124
    %v328 = vpop.permute.xlu0 %327
    %v331 = vadd.f32 %v315, %v326
    %v332 = vadd.f32 %v316, %v328
    %s333 = sld [smem:[#allocation2]]
    %v334 = vstv %s333
    %v335 = vadd.f32 %v331, %v334
    %v336 = vadd.f32 %v332, %v334
    %vm337 = vcmask 122880
    %338 = vst.msk [vmem:[#allocation8] sm:$0x1] %vm337, %v335
    %339 = vst.msk [vmem:[#allocation8 + $0x1] sm:$0x1] %vm337, %v336
    // Predicated region
    $region22: #{tpu_custom_call.1} parent=1 // pred_check
      _
    $region23: #{tpu_custom_call.1} parent=1 // pred_check_branch
      %341 = sbr.rel (0) target = $region25
    $region24: #{tpu_custom_call.1} parent=1 // pred_region
      %s343 = ssub.s32 32, 32
      %344 = vsyncadd [#allocation5], %s343
      %s345 = sshll.u32 [#allocation8], 4
      %s346 = int_to_ptr.vmem [resolvable:$true] %s345
      %351 = dma.vmem_to_hbm [thread:$0]  %s346, 32, %s3, [#allocation5], 16, 16, 1
    $region25: #{tpu_custom_call.1} parent=1 // pred_fallthru
      _
    // Predicated region
    $region26: #{tpu_custom_call.1} parent=1 // pred_check
      _
    $region27: #{tpu_custom_call.1} parent=1 // pred_check_branch
      %353 = sbr.rel (0) target = $region29
    $region28: #{tpu_custom_call.1} parent=1 // pred_region
      %354 = dma.done [#allocation5], 32
    $region29: #{tpu_custom_call.1} parent=1 // pred_fallthru
      _
    %355 = vsyncpa [#allocation4], 1
    %356 = vsyncpa [#allocation5], 1
    %357 = vsyncpa [#allocation6], 1

</llo_original>
